<compile_context>
chip_gen: v5e
topology: v5e:2x2
jax: 0.10.0
libtpu: 0.0.40
codegen_flags: <defaults>
</compile_context>

<pallas_src>
import functools

import jax
import jax.numpy as jnp
from jax.experimental import pallas as pl
from jax.experimental.pallas import tpu as pltpu


def _round_up(n, m):
    return ((n + m - 1) // m) * m


_NEG_INF = -1e30  # finite "-inf": exp() underflows to 0 without inf/NaN paths


# ---------------------------------------------------------------------------
# Kernel 1: small problems — whole (B, Lp, Cp) tensor in a single grid step.
# ---------------------------------------------------------------------------
def _qkv_attention_small_kernel(x_ref, w_qkv_ref, b_qkv_ref, w_o_ref, b_o_ref,
                                o_ref, *, true_len):
    b, lp, cp = x_ref.shape
    x2 = x_ref[...].reshape(b * lp, cp)                        # (B*Lp, Cp) bf16

    # Fused QKV projection as one wide MXU matmul over B*Lp rows.
    # 1/sqrt(C) is pre-folded into the query columns by the wrapper.
    qkv = (jnp.dot(x2, w_qkv_ref[...], preferred_element_type=jnp.float32)
           + b_qkv_ref[...]).reshape(b, lp, 3 * cp)            # (B, Lp, 3Cp) f32
    q = qkv[:, :, :cp]
    k = qkv[:, :, cp:2 * cp]
    v = qkv[:, :, 2 * cp:]

    scores = jnp.einsum("bqc,bkc->bqk", q.astype(jnp.bfloat16),
                        k.astype(jnp.bfloat16),
                        preferred_element_type=jnp.float32)    # (B, Lp, Lp)
    if true_len != lp:   # mask zero-padded keys so softmax mass does not leak
        key_idx = jax.lax.broadcasted_iota(jnp.int32, scores.shape, 2)
        scores = jnp.where(key_idx < true_len, scores, _NEG_INF)

    scores = scores - jnp.max(scores, axis=-1, keepdims=True)
    p = jnp.exp(scores)                                        # f32 (v5e-safe)
    inv_denom = pl.reciprocal(jnp.sum(p, axis=-1, keepdims=True), approx=True)

    out = jnp.einsum("bqk,bkc->bqc", p.astype(jnp.bfloat16),
                     v.astype(jnp.bfloat16),
                     preferred_element_type=jnp.float32) * inv_denom

    proj = (jnp.dot(out.reshape(b * lp, cp).astype(jnp.bfloat16), w_o_ref[...],
                    preferred_element_type=jnp.float32)
            + b_o_ref[...]).reshape(b, lp, cp)

    # Dropout == identity (eval mode); then residual.
    o_ref[...] = (proj + x_ref[...].astype(jnp.float32)).astype(o_ref.dtype)


# ---------------------------------------------------------------------------
# Kernel 2: query-tiled path with per-batch KV cache in VMEM scratch.
# grid = (batch, query_tile); batch "parallel", query_tile "arbitrary".
# ---------------------------------------------------------------------------
def _qkv_attention_tiled_kernel(x_ref, w_qkv_ref, b_qkv_ref, w_o_ref, b_o_ref,
                                o_ref, kT_sc, v_sc, *, true_len, tq):
    cp = o_ref.shape[-1]
    lp = x_ref.shape[1]
    qi = pl.program_id(1)

    # Once per batch element: project K and V over the whole (padded) sequence
    # and cache them.  K is stored transposed (Cp, Lp) so the scores matmul is
    # a plain (TQ,Cp)@(Cp,Lp) — no per-tile XLU transpose.
    @pl.when(qi == 0)
    def _():
        x_all = x_ref[0]                                       # (Lp, Cp) bf16
        k = jnp.dot(x_all, w_qkv_ref[:, cp:2 * cp],
                    preferred_element_type=jnp.float32) + b_qkv_ref[:, cp:2 * cp]
        kT_sc[...] = jnp.transpose(k).astype(jnp.bfloat16)     # (Cp, Lp)
        v = jnp.dot(x_all, w_qkv_ref[:, 2 * cp:],
                    preferred_element_type=jnp.float32) + b_qkv_ref[:, 2 * cp:]
        v_sc[...] = v.astype(jnp.bfloat16)                     # (Lp, Cp)

    # This tile's query rows, sliced from the already-resident full block
    # (x is read from HBM only once per batch element).
    row0 = pl.multiple_of(qi * tq, tq)
    x_q = x_ref[0, pl.ds(row0, tq), :]                         # (TQ, Cp) bf16
    q = jnp.dot(x_q, w_qkv_ref[:, :cp],
                preferred_element_type=jnp.float32) + b_qkv_ref[:, :cp]

    scores = jnp.dot(q.astype(jnp.bfloat16), kT_sc[...],
                     preferred_element_type=jnp.float32)       # (TQ, Lp)
    if true_len != lp:
        key_idx = jax.lax.broadcasted_iota(jnp.int32, scores.shape, 1)
        scores = jnp.where(key_idx < true_len, scores, _NEG_INF)

    scores = scores - jnp.max(scores, axis=-1, keepdims=True)
    p = jnp.exp(scores)
    inv_denom = pl.reciprocal(jnp.sum(p, axis=-1, keepdims=True), approx=True)

    out = jnp.dot(p.astype(jnp.bfloat16), v_sc[...],
                  preferred_element_type=jnp.float32) * inv_denom   # (TQ, Cp)

    proj = jnp.dot(out.astype(jnp.bfloat16), w_o_ref[...],
                   preferred_element_type=jnp.float32) + b_o_ref[...]

    o_ref[0] = (proj + x_q.astype(jnp.float32)).astype(o_ref.dtype)


def _pick_query_tile(lp):
    """256-row query tiles for v6e/v7x (2x256 MXU); 128 for v5-class parts."""
    tq = 256
    try:
        kind = jax.devices()[0].device_kind.lower()
        if "v5" in kind:
            tq = 128
    except Exception:
        pass
    if lp % tq != 0:
        tq = 128
    return tq


def qkv_attention(x_ncl, params):
    """Pallas forward for QKVAttention.  x_ncl: (B, C, L) float32."""
    B, C, L = x_ncl.shape

    # Lane-dense channel axis: pad C up to a multiple of 128 (padded channels
    # stay exactly zero end-to-end, so slicing back is exact).
    CP = _round_up(max(C, 128), 128)
    pad_c = CP - C
    scale = 1.0 / (float(C) ** 0.5)

    def conv_w(name, s=1.0):
        # Conv1d weight (Cout, Cin, 1) -> (Cin, Cout) so the 1x1 conv is x @ W.
        w = jnp.transpose(params[name + "_w"][:, :, 0], (1, 0)) * s
        if pad_c:
            w = jnp.pad(w, ((0, pad_c), (0, pad_c)))
        return w

    def conv_b(name, s=1.0):
        bvec = params[name + "_b"] * s
        if pad_c:
            bvec = jnp.pad(bvec, ((0, pad_c),))
        return bvec.reshape(1, CP).astype(jnp.float32)

    # Fused QKV weights; 1/sqrt(C) folded into the query columns.  Weights are
    # bf16 (MXU-only consumers), biases stay f32.
    w_qkv = jnp.concatenate(
        [conv_w("query", scale), conv_w("key"), conv_w("value")],
        axis=1).astype(jnp.bfloat16)                           # (CP, 3CP)
    b_qkv = jnp.concatenate(
        [conv_b("query", scale), conv_b("key"), conv_b("value")], axis=1)
    w_o = conv_w("out").astype(jnp.bfloat16)                   # (CP, CP)
    b_o = conv_b("out")                                        # (1, CP)

    # Decide small (single grid step) vs. tiled path from a VMEM estimate.
    lp_small = _round_up(L, 16)        # keep bf16 sublane packing aligned
    small_est = (B * lp_small * CP * 22          # x/out/qkv/attn-out blocks
                 + 2 * B * lp_small * lp_small * 4
                 + 8 * CP * CP * 2)
    use_small = small_est <= (8 << 20)

    LP = lp_small if use_small else _round_up(L, 128)
    pad_l = LP - L

    # NCL -> channels-last bf16 (halves the dominant HBM read stream).
    x_blc = jnp.transpose(x_ncl, (0, 2, 1))
    if pad_c or pad_l:
        x_blc = jnp.pad(x_blc, ((0, 0), (0, pad_l), (0, pad_c)))
    x_blc = x_blc.astype(jnp.bfloat16)

    bytes_accessed = int(B * LP * CP * 6 + 8 * CP * CP + 16 * CP)

    if use_small:
        kernel = functools.partial(_qkv_attention_small_kernel, true_len=L)
        cost = pl.CostEstimate(
            flops=int(2 * B * LP * CP * 3 * CP + 4 * B * LP * LP * CP
                      + 2 * B * LP * CP * CP),
            transcendentals=int(B * LP * LP),
            bytes_accessed=bytes_accessed)
        out_padded = pl.pallas_call(
            kernel,
            out_shape=jax.ShapeDtypeStruct((B, LP, CP), jnp.float32),
            grid_spec=pltpu.PrefetchScalarGridSpec(
                num_scalar_prefetch=0,
                grid=(1,),
                in_specs=[pl.BlockSpec((B, LP, CP), lambda i: (0, 0, 0)),
                          pl.BlockSpec((CP, 3 * CP), lambda i: (0, 0)),
                          pl.BlockSpec((1, 3 * CP), lambda i: (0, 0)),
                          pl.BlockSpec((CP, CP), lambda i: (0, 0)),
                          pl.BlockSpec((1, CP), lambda i: (0, 0))],
                out_specs=pl.BlockSpec((B, LP, CP), lambda i: (0, 0, 0))),
            compiler_params=pltpu.CompilerParams(
                dimension_semantics=("arbitrary",)),
            cost_estimate=cost,
        )(x_blc, w_qkv, b_qkv, w_o, b_o)
    else:
        TQ = _pick_query_tile(LP)
        nqt = LP // TQ
        kernel = functools.partial(_qkv_attention_tiled_kernel,
                                   true_len=L, tq=TQ)
        # Per-core VMEM residency estimate -> explicit scoped-vmem limit
        # (re-derived for the 64 MiB v7x budget; capped there).
        est = (2 * LP * CP * 2           # x block, bf16, double-buffered
               + 2 * TQ * CP * 4         # out block, f32, double-buffered
               + 2 * 8 * CP * CP         # w_qkv + w_o, bf16, double-buffered
               + 2 * LP * CP * 2         # kT + v scratch, bf16
               + LP * CP * 4             # K/V projection transient, f32
               + 3 * TQ * LP * 4         # scores / p transients, f32
               + 6 * TQ * CP * 4)        # q / out / proj transients, f32
        vmem_limit = int(min(max(32 << 20, 2 * est), 64 << 20))
        cost = pl.CostEstimate(
            flops=int(B * 4 * LP * CP * CP                      # K,V once/batch
                      + B * LP * (4 * CP * CP + 4 * LP * CP)),  # Q/scores/av/out
            transcendentals=int(B * LP * LP),
            bytes_accessed=bytes_accessed)
        out_padded = pl.pallas_call(
            kernel,
            out_shape=jax.ShapeDtypeStruct((B, LP, CP), jnp.float32),
            grid_spec=pltpu.PrefetchScalarGridSpec(
                num_scalar_prefetch=0,
                grid=(B, nqt),
                in_specs=[pl.BlockSpec((1, LP, CP), lambda b, qi: (b, 0, 0)),
                          pl.BlockSpec((CP, 3 * CP), lambda b, qi: (0, 0)),
                          pl.BlockSpec((1, 3 * CP), lambda b, qi: (0, 0)),
                          pl.BlockSpec((CP, CP), lambda b, qi: (0, 0)),
                          pl.BlockSpec((1, CP), lambda b, qi: (0, 0))],
                out_specs=pl.BlockSpec((1, TQ, CP), lambda b, qi: (b, qi, 0)),
                scratch_shapes=[pltpu.VMEM((CP, LP), jnp.bfloat16),   # K^T cache
                                pltpu.VMEM((LP, CP), jnp.bfloat16)]), # V cache
            compiler_params=pltpu.CompilerParams(
                # qi axis MUST be "arbitrary": KV scratch is carried across it.
                dimension_semantics=("parallel", "arbitrary"),
                vmem_limit_bytes=vmem_limit),
            cost_estimate=cost,
        )(x_blc, w_qkv, b_qkv, w_o, b_o)

    out_blc = out_padded[:, :L, :C]
    return jnp.transpose(out_blc, (0, 2, 1))                   # back to (B, C, L)


def qkv_attention_reference(x_ncl, params):
    """Pure-JAX f32 reference mirroring the PyTorch forward (eval mode)."""
    C = x_ncl.shape[1]

    def conv1x1(x, w, b):
        # x: (B, C, L), w: (Cout, Cin, 1), b: (Cout,)
        return jnp.einsum("oc,bcl->bol", w[:, :, 0], x) + b[None, :, None]

    q = conv1x1(x_ncl, params["query_w"], params["query_b"])
    k = conv1x1(x_ncl, params["key_w"], params["key_b"])
    v = conv1x1(x_ncl, params["value_w"], params["value_b"])
    scores = jnp.einsum("bcl,bcm->blm", q, k) / (C ** 0.5)
    attn = jax.nn.softmax(scores, axis=-1)
    out = jnp.einsum("blm,bcm->blc", attn, v)          # attn @ v^T -> (B, L, C)
    out = jnp.transpose(out, (0, 2, 1))                # (B, C, L)
    out = conv1x1(out, params["out_w"], params["out_b"])
    return out + x_ncl                                 # dropout = identity


def init_params(key, channels):
    names = ["query", "key", "value", "out"]
    params = {}
    keys = jax.random.split(key, 2 * len(names))
    bound = 1.0 / (channels ** 0.5)
    for i, n in enumerate(names):
        params[n + "_w"] = jax.random.uniform(
            keys[2 * i], (channels, channels, 1), jnp.float32, -bound, bound)
        params[n + "_b"] = jax.random.uniform(
            keys[2 * i + 1], (channels,), jnp.float32, -bound, bound)
    return params


if __name__ == "__main__":
    B, C, L = 2, 32, 16
    key = jax.random.PRNGKey(0)
    k_x, k_p = jax.random.split(key)
    x = jax.random.normal(k_x, (B, C, L), dtype=jnp.float32)
    params = init_params(k_p, C)

    out = jax.block_until_ready(jax.jit(qkv_attention)(x, params))
    ref = jax.block_until_ready(qkv_attention_reference(x, params))

    assert out.shape == (B, C, L)
    # bf16 MXU operands / bf16 activation stream + approx reciprocal ->
    # loosened tolerance vs the f32 reference.
    assert jnp.allclose(out, ref, atol=5e-2, rtol=5e-2), \
        f"max abs diff {jnp.max(jnp.abs(out - ref))}"
    print("KERNEL_OK")
</pallas_src>

<mosaic_0001>
module attributes {stable_mosaic.version = 11 : i64} {
  func.func @_qkv_attention_small_kernel(%arg0: i32, %arg1: memref<2x16x128xbf16, #tpu.memory_space<vmem>>, %arg2: memref<128x384xbf16, #tpu.memory_space<vmem>>, %arg3: memref<1x384xf32, #tpu.memory_space<vmem>>, %arg4: memref<128x128xbf16, #tpu.memory_space<vmem>>, %arg5: memref<1x128xf32, #tpu.memory_space<vmem>>, %arg6: memref<2x16x128xf32, #tpu.memory_space<vmem>>) attributes {dimension_semantics = [#tpu.dimension_semantics<arbitrary>], iteration_bounds = array<i64: 1>, scalar_prefetch = 0 : i64, scratch_operands = 0 : i64, tpu.core_type = #tpu.core_type<tc>, window_params = [{pipeline_mode = #tpu.pipeline_mode<synchronous>, transform_indices = @transform_0, window_bounds = array<i64: 2, 16, 128>}, {pipeline_mode = #tpu.pipeline_mode<synchronous>, transform_indices = @transform_1, window_bounds = array<i64: 128, 384>}, {pipeline_mode = #tpu.pipeline_mode<synchronous>, transform_indices = @transform_2, window_bounds = array<i64: 1, 384>}, {pipeline_mode = #tpu.pipeline_mode<synchronous>, transform_indices = @transform_3, window_bounds = array<i64: 128, 128>}, {pipeline_mode = #tpu.pipeline_mode<synchronous>, transform_indices = @transform_4, window_bounds = array<i64: 1, 128>}, {pipeline_mode = #tpu.pipeline_mode<synchronous>, transform_indices = @transform_5, window_bounds = array<i64: 2, 16, 128>}]} {
    %c0 = arith.constant 0 : index
    %c0_0 = arith.constant 0 : index
    %c0_1 = arith.constant 0 : index
    %0 = vector.load %arg1[%c0, %c0_0, %c0_1] : memref<2x16x128xbf16, #tpu.memory_space<vmem>>, vector<2x16x128xbf16>
    %1 = vector.shape_cast %0 : vector<2x16x128xbf16> to vector<32x128xbf16>
    %c0_2 = arith.constant 0 : index
    %c0_3 = arith.constant 0 : index
    %2 = vector.load %arg2[%c0_2, %c0_3] : memref<128x384xbf16, #tpu.memory_space<vmem>>, vector<128x384xbf16>
    %cst = arith.constant dense<0.000000e+00> : vector<32x384xf32>
    %3 = tpu.matmul %1, %2, %cst {dimension_numbers = #tpu.dot_dimension_numbers<[1], [0], [0], [1], [0, 0, 1, 1], [], []>} : vector<32x128xbf16>, vector<128x384xbf16>, vector<32x384xf32> -> vector<32x384xf32>
    %c0_4 = arith.constant 0 : index
    %c0_5 = arith.constant 0 : index
    %4 = vector.load %arg3[%c0_4, %c0_5] : memref<1x384xf32, #tpu.memory_space<vmem>>, vector<1x384xf32>
    %5 = vector.broadcast %4 : vector<1x384xf32> to vector<32x384xf32>
    %6 = arith.addf %3, %5 : vector<32x384xf32>
    %7 = vector.shape_cast %6 : vector<32x384xf32> to vector<2x16x384xf32>
    %8 = vector.extract_strided_slice %7 {offsets = [0, 0, 0], sizes = [2, 16, 128], strides = [1, 1, 1]} : vector<2x16x384xf32> to vector<2x16x128xf32>
    %9 = vector.extract_strided_slice %7 {offsets = [0, 0, 128], sizes = [2, 16, 128], strides = [1, 1, 1]} : vector<2x16x384xf32> to vector<2x16x128xf32>
    %10 = vector.extract_strided_slice %7 {offsets = [0, 0, 256], sizes = [2, 16, 128], strides = [1, 1, 1]} : vector<2x16x384xf32> to vector<2x16x128xf32>
    %11 = arith.truncf %8 : vector<2x16x128xf32> to vector<2x16x128xbf16>
    %12 = arith.truncf %9 : vector<2x16x128xf32> to vector<2x16x128xbf16>
    "tpu.trace_start"() <{level = 10 : i32, message = "bqc,bkc->bqk"}> : () -> ()
    %cst_6 = arith.constant dense<0.000000e+00> : vector<2x16x16xf32>
    %13 = tpu.matmul %11, %12, %cst_6 {dimension_numbers = #tpu.dot_dimension_numbers<[2], [2], [1], [1], [0, 0, 0, 1, 1, 1], [0], [0]>} : vector<2x16x128xbf16>, vector<2x16x128xbf16>, vector<2x16x16xf32> -> vector<2x16x16xf32>
    "tpu.trace_stop"() : () -> ()
    %cst_7 = arith.constant dense<0xFF800000> : vector<2x16xf32>
    %14 = vector.multi_reduction <maximumf>, %13, %cst_7 [2] : vector<2x16x16xf32> to vector<2x16xf32>
    %15 = vector.shape_cast %14 : vector<2x16xf32> to vector<2x16x1xf32>
    %16 = vector.broadcast %15 : vector<2x16x1xf32> to vector<2x16x16xf32>
    %17 = arith.subf %13, %16 : vector<2x16x16xf32>
    %18 = math.exp %17 : vector<2x16x16xf32>
    %cst_8 = arith.constant dense<0.000000e+00> : vector<2x16xf32>
    %19 = vector.multi_reduction <add>, %18, %cst_8 [2] : vector<2x16x16xf32> to vector<2x16xf32>
    %20 = vector.shape_cast %19 : vector<2x16xf32> to vector<2x16x1xf32>
    %21 = tpu.reciprocal %20 {approx = true} : vector<2x16x1xf32> -> vector<2x16x1xf32>
    %22 = arith.truncf %18 : vector<2x16x16xf32> to vector<2x16x16xbf16>
    %23 = arith.truncf %10 : vector<2x16x128xf32> to vector<2x16x128xbf16>
    "tpu.trace_start"() <{level = 10 : i32, message = "bqk,bkc->bqc"}> : () -> ()
    %cst_9 = arith.constant dense<0.000000e+00> : vector<2x16x128xf32>
    %24 = tpu.matmul %22, %23, %cst_9 {dimension_numbers = #tpu.dot_dimension_numbers<[2], [1], [1], [2], [0, 0, 0, 1, 1, 2], [0], [0]>} : vector<2x16x16xbf16>, vector<2x16x128xbf16>, vector<2x16x128xf32> -> vector<2x16x128xf32>
    "tpu.trace_stop"() : () -> ()
    %25 = vector.broadcast %21 : vector<2x16x1xf32> to vector<2x16x128xf32>
    %26 = arith.mulf %24, %25 : vector<2x16x128xf32>
    %27 = vector.shape_cast %26 : vector<2x16x128xf32> to vector<32x128xf32>
    %28 = arith.truncf %27 : vector<32x128xf32> to vector<32x128xbf16>
    %c0_10 = arith.constant 0 : index
    %c0_11 = arith.constant 0 : index
    %29 = vector.load %arg4[%c0_10, %c0_11] : memref<128x128xbf16, #tpu.memory_space<vmem>>, vector<128x128xbf16>
    %cst_12 = arith.constant dense<0.000000e+00> : vector<32x128xf32>
    %30 = tpu.matmul %28, %29, %cst_12 {dimension_numbers = #tpu.dot_dimension_numbers<[1], [0], [0], [1], [0, 0, 1, 1], [], []>} : vector<32x128xbf16>, vector<128x128xbf16>, vector<32x128xf32> -> vector<32x128xf32>
    %c0_13 = arith.constant 0 : index
    %c0_14 = arith.constant 0 : index
    %31 = vector.load %arg5[%c0_13, %c0_14] : memref<1x128xf32, #tpu.memory_space<vmem>>, vector<1x128xf32>
    %32 = vector.broadcast %31 : vector<1x128xf32> to vector<32x128xf32>
    %33 = arith.addf %30, %32 : vector<32x128xf32>
    %34 = vector.shape_cast %33 : vector<32x128xf32> to vector<2x16x128xf32>
    %c0_15 = arith.constant 0 : index
    %c0_16 = arith.constant 0 : index
    %c0_17 = arith.constant 0 : index
    %35 = vector.load %arg1[%c0_15, %c0_16, %c0_17] : memref<2x16x128xbf16, #tpu.memory_space<vmem>>, vector<2x16x128xbf16>
    %36 = arith.extf %35 : vector<2x16x128xbf16> to vector<2x16x128xf32>
    %37 = arith.addf %34, %36 : vector<2x16x128xf32>
    %c0_18 = arith.constant 0 : index
    %c0_19 = arith.constant 0 : index
    %c0_20 = arith.constant 0 : index
    %38 = vector.load %arg6[%c0_18, %c0_19, %c0_20] : memref<2x16x128xf32, #tpu.memory_space<vmem>>, vector<2x16x128xf32>
    tpu.vector_store %arg6[%c0_18, %c0_19, %c0_20], %37 {strides = array<i32>} : memref<2x16x128xf32, #tpu.memory_space<vmem>>, vector<2x16x128xf32>,
    return
  }
  func.func @transform_0(%arg0: i32) -> (i32, i32, i32) {
    %c0_i32 = arith.constant 0 : i32
    %c0_i32_0 = arith.constant 0 : i32
    %c0_i32_1 = arith.constant 0 : i32
    %c0_i32_2 = arith.constant 0 : i32
    return %c0_i32, %c0_i32_0, %c0_i32_1 : i32, i32, i32
  }
  func.func @transform_1(%arg0: i32) -> (i32, i32) {
    %c0_i32 = arith.constant 0 : i32
    %c0_i32_0 = arith.constant 0 : i32
    %c0_i32_1 = arith.constant 0 : i32
    return %c0_i32, %c0_i32_0 : i32, i32
  }
  func.func @transform_2(%arg0: i32) -> (i32, i32) {
    %c0_i32 = arith.constant 0 : i32
    %c0_i32_0 = arith.constant 0 : i32
    %c0_i32_1 = arith.constant 0 : i32
    return %c0_i32, %c0_i32_0 : i32, i32
  }
  func.func @transform_3(%arg0: i32) -> (i32, i32) {
    %c0_i32 = arith.constant 0 : i32
    %c0_i32_0 = arith.constant 0 : i32
    %c0_i32_1 = arith.constant 0 : i32
    return %c0_i32, %c0_i32_0 : i32, i32
  }
  func.func @transform_4(%arg0: i32) -> (i32, i32) {
    %c0_i32 = arith.constant 0 : i32
    %c0_i32_0 = arith.constant 0 : i32
    %c0_i32_1 = arith.constant 0 : i32
    return %c0_i32, %c0_i32_0 : i32, i32
  }
  func.func @transform_5(%arg0: i32) -> (i32, i32, i32) {
    %c0_i32 = arith.constant 0 : i32
    %c0_i32_0 = arith.constant 0 : i32
    %c0_i32_1 = arith.constant 0 : i32
    %c0_i32_2 = arith.constant 0 : i32
    return %c0_i32, %c0_i32_0, %c0_i32_1 : i32, i32, i32
  }
}

</mosaic_0001>

<llo_original>
// kernel: qkv_attention.1
$region0: #{qkv_attention.1}
  #allocation0 [shape = 'u32[]', space=smem, size = 0x4, offset = 0x4, fixed_abs, tag = 'smem constant byte address 0x4 - core index']
  #allocation1 [shape = 'u32[72,128]{1,0:T(1,128)}', space=vmem, size = 0x9000, scoped, tag = 'internal scratch']
  %s0 = inlined_call_operand.vmem [shape: bf16[2,16,128], index: 0, kind: input, shape index: {}]
  %s1 = inlined_call_operand.vmem [shape: bf16[128,384], index: 1, kind: input, shape index: {}]
  %s2 = inlined_call_operand.vmem [shape: f32[1,384], index: 2, kind: input, shape index: {}]
  %s3 = inlined_call_operand.vmem [shape: bf16[128,128], index: 3, kind: input, shape index: {}]
  %s4 = inlined_call_operand.vmem [shape: f32[1,128], index: 4, kind: input, shape index: {}]
  %s5 = inlined_call_operand.vmem [shape: f32[2,16,128], index: 5, kind: output, shape index: {}]
  %s6 = sld [smem:[#allocation0]]
  $region30: #{qkv_attention.1} parent=0
    _
  %s8 = ssub.s32 1, %s6
  %s9 = scalar_select 0, %s8, %s6
  // Predicated region
  $region2: #{qkv_attention.1} parent=0 // pred_check
    _
  $region3: #{qkv_attention.1} parent=0 // pred_check_branch
    %11 = sbr.rel (0) target = $region5
  $region4: #{qkv_attention.1} parent=0 // pred_region
    _
  $region5: #{qkv_attention.1} parent=0 // pred_fallthru
    _
  // Predicated region
  $region6: #{qkv_attention.1} parent=0 // pred_check
    _
  $region7: #{qkv_attention.1} parent=0 // pred_check_branch
    %13 = sbr.rel (0) target = $region9
  $region8: #{qkv_attention.1} parent=0 // pred_region
    _
  $region9: #{qkv_attention.1} parent=0 // pred_fallthru
    _
  // Predicated region
  $region10: #{qkv_attention.1} parent=0 // pred_check
    _
  $region11: #{qkv_attention.1} parent=0 // pred_check_branch
    %15 = sbr.rel (0) target = $region13
  $region12: #{qkv_attention.1} parent=0 // pred_region
    _
  $region13: #{qkv_attention.1} parent=0 // pred_fallthru
    _
  // Predicated region
  $region14: #{qkv_attention.1} parent=0 // pred_check
    _
  $region15: #{qkv_attention.1} parent=0 // pred_check_branch
    %17 = sbr.rel (0) target = $region17
  $region16: #{qkv_attention.1} parent=0 // pred_region
    _
  $region17: #{qkv_attention.1} parent=0 // pred_fallthru
    _
  // Predicated region
  $region18: #{qkv_attention.1} parent=0 // pred_check
    _
  $region19: #{qkv_attention.1} parent=0 // pred_check_branch
    %19 = sbr.rel (0) target = $region21
  $region20: #{qkv_attention.1} parent=0 // pred_region
    _
  $region21: #{qkv_attention.1} parent=0 // pred_fallthru
    _
  %v21 = vld [vmem:[%s0] sm:$0xf]
  %v22 = vld [vmem:[%s0 + $0x4] sm:$0xf]
  %v23 = vld [vmem:[%s0 + $0x8] sm:$0xf]
  %v24 = vld [vmem:[%s0 + $0xc] sm:$0xf]
  %v25 = vld [vmem:[%s1] sm:$0xff]
  %v26 = vld [vmem:[%s1 + $0x8] sm:$0xf]
  %v27 = vld [vmem:[%s1 + $0xc] sm:$0xff]
  %v28 = vld [vmem:[%s1 + $0x14] sm:$0xf]
  %v29 = vld [vmem:[%s1 + $0x18] sm:$0xff]
  %v30 = vld [vmem:[%s1 + $0x20] sm:$0xf]
  %v31 = vld [vmem:[%s1 + $0x24] sm:$0xff]
  %v32 = vld [vmem:[%s1 + $0x2c] sm:$0xf]
  %v33 = vld [vmem:[%s1 + $0x30] sm:$0xff]
  %v34 = vld [vmem:[%s1 + $0x38] sm:$0xf]
  %v35 = vld [vmem:[%s1 + $0x3c] sm:$0xff]
  %v36 = vld [vmem:[%s1 + $0x44] sm:$0xf]
  %v37 = vld [vmem:[%s1 + $0x48] sm:$0xff]
  %v38 = vld [vmem:[%s1 + $0x50] sm:$0xf]
  %v39 = vld [vmem:[%s1 + $0x54] sm:$0xff]
  %v40 = vld [vmem:[%s1 + $0x5c] sm:$0xf]
  %v41 = vld [vmem:[%s1 + $0x60] sm:$0xff]
  %v42 = vld [vmem:[%s1 + $0x68] sm:$0xf]
  %v43 = vld [vmem:[%s1 + $0x6c] sm:$0xff]
  %v44 = vld [vmem:[%s1 + $0x74] sm:$0xf]
  %v45 = vld [vmem:[%s1 + $0x78] sm:$0xff]
  %v46 = vld [vmem:[%s1 + $0x80] sm:$0xf]
  %v47 = vld [vmem:[%s1 + $0x84] sm:$0xff]
  %v48 = vld [vmem:[%s1 + $0x8c] sm:$0xf]
  %v49 = vld [vmem:[%s1 + $0x90] sm:$0xff]
  %v50 = vld [vmem:[%s1 + $0x98] sm:$0xf]
  %v51 = vld [vmem:[%s1 + $0x9c] sm:$0xff]
  %v52 = vld [vmem:[%s1 + $0xa4] sm:$0xf]
  %v53 = vld [vmem:[%s1 + $0xa8] sm:$0xff]
  %v54 = vld [vmem:[%s1 + $0xb0] sm:$0xf]
  %v55 = vld [vmem:[%s1 + $0xb4] sm:$0xff]
  %v56 = vld [vmem:[%s1 + $0xbc] sm:$0xf]
  %v57 = vld [vmem:[%s2] sm:$0x7]
  %v59 = vperm.slane %v57, 0
  %v60 = vperm.slane %v57, 1
  %v61 = vperm.slane %v57, 2
  %v69 = vunpack.c.l.b16 %v21
  %v70 = vunpack.c.l.b16 %v22
  %v71 = vunpack.c.l.b16 %v23
  %v72 = vunpack.c.l.b16 %v24
  %v73 = vpack.c.b16 %v70, %v69
  %v74 = vpack.c.b16 %v72, %v71
  %v109 = vunpack.c.l.b16 %v25
  %v110 = vunpack.c.h.b16 %v25
  %v111 = vunpack.c.l.b16 %v26
  %v112 = vunpack.c.l.b16 %v27
  %v113 = vunpack.c.h.b16 %v27
  %v114 = vunpack.c.l.b16 %v28
  %v115 = vunpack.c.l.b16 %v29
  %v116 = vunpack.c.h.b16 %v29
  %v117 = vunpack.c.l.b16 %v30
  %v118 = vunpack.c.l.b16 %v31
  %v119 = vunpack.c.h.b16 %v31
  %v120 = vunpack.c.l.b16 %v32
  %v121 = vunpack.c.l.b16 %v33
  %v122 = vunpack.c.h.b16 %v33
  %v123 = vunpack.c.l.b16 %v34
  %v124 = vunpack.c.l.b16 %v35
  %v125 = vunpack.c.h.b16 %v35
  %v126 = vunpack.c.l.b16 %v36
  %v127 = vunpack.c.l.b16 %v37
  %v128 = vunpack.c.h.b16 %v37
  %v129 = vunpack.c.l.b16 %v38
  %v130 = vunpack.c.l.b16 %v39
  %v131 = vunpack.c.h.b16 %v39
  %v132 = vunpack.c.l.b16 %v40
  %v133 = vunpack.c.l.b16 %v41
  %v134 = vunpack.c.h.b16 %v41
  %v135 = vunpack.c.l.b16 %v42
  %v136 = vunpack.c.l.b16 %v43
  %v137 = vunpack.c.h.b16 %v43
  %v138 = vunpack.c.l.b16 %v44
  %v139 = vunpack.c.l.b16 %v45
  %v140 = vunpack.c.h.b16 %v45
  %v141 = vunpack.c.l.b16 %v46
  %v142 = vunpack.c.l.b16 %v47
  %v143 = vunpack.c.h.b16 %v47
  %v144 = vunpack.c.l.b16 %v48
  %v145 = vunpack.c.l.b16 %v49
  %v146 = vunpack.c.h.b16 %v49
  %v147 = vunpack.c.l.b16 %v50
  %v148 = vunpack.c.l.b16 %v51
  %v149 = vunpack.c.h.b16 %v51
  %v150 = vunpack.c.l.b16 %v52
  %v151 = vunpack.c.l.b16 %v53
  %v152 = vunpack.c.h.b16 %v53
  %v153 = vunpack.c.l.b16 %v54
  %v154 = vunpack.c.l.b16 %v55
  %v155 = vunpack.c.h.b16 %v55
  %v156 = vunpack.c.l.b16 %v56
  %v157 = vpack.c.b16 %v112, %v109
  %v158 = vpack.c.b16 %v113, %v110
  %v159 = vpack.c.b16 %v114, %v111
  %v160 = vpack.c.b16 %v118, %v115
  %v161 = vpack.c.b16 %v119, %v116
  %v162 = vpack.c.b16 %v120, %v117
  %v163 = vpack.c.b16 %v124, %v121
  %v164 = vpack.c.b16 %v125, %v122
  %v165 = vpack.c.b16 %v126, %v123
  %v166 = vpack.c.b16 %v130, %v127
  %v167 = vpack.c.b16 %v131, %v128
  %v168 = vpack.c.b16 %v132, %v129
  %v169 = vpack.c.b16 %v136, %v133
  %v170 = vpack.c.b16 %v137, %v134
  %v171 = vpack.c.b16 %v138, %v135
  %v172 = vpack.c.b16 %v142, %v139
  %v173 = vpack.c.b16 %v143, %v140
  %v174 = vpack.c.b16 %v144, %v141
  %v175 = vpack.c.b16 %v148, %v145
  %v176 = vpack.c.b16 %v149, %v146
  %v177 = vpack.c.b16 %v150, %v147
  %v178 = vpack.c.b16 %v154, %v151
  %v179 = vpack.c.b16 %v155, %v152
  %v180 = vpack.c.b16 %v156, %v153
  %205 = vmatpush.bf16.msra.mxu0 %v178
  %206 = vmatpush.bf16.msra.mxu0 %v175
  %207 = vmatpush.bf16.msra.mxu0 %v172
  %208 = vmatpush.bf16.msra.mxu0 %v169
  %209 = vmatpush.bf16.msra.mxu0 %v166
  %210 = vmatpush.bf16.msra.mxu0 %v163
  %211 = vmatpush.bf16.msra.mxu0 %v160
  %212 = vmatpush.bf16.msra.mxu0 %v157
  %213 = vmatmul.bf16.gmra.mxu0 %v73
  %v214 = vpop.f32.mrf.mxu0
  %v215 = vadd.f32 %v59, %v214
  %v216 = vpop.f32.mrf.mxu0
  %v217 = vadd.f32 %v59, %v216
  %218 = vmatmul.bf16.gmra.mxu0 %v74
  %v219 = vpop.f32.mrf.mxu0
  %v220 = vadd.f32 %v59, %v219
  %v221 = vpop.f32.mrf.mxu0
  %v222 = vadd.f32 %v59, %v221
  %223 = vdwg.mxu0
  %224 = vmatpush.bf16.msra.mxu0 %v179
  %225 = vmatpush.bf16.msra.mxu0 %v176
  %226 = vmatpush.bf16.msra.mxu0 %v173
  %227 = vmatpush.bf16.msra.mxu0 %v170
  %228 = vmatpush.bf16.msra.mxu0 %v167
  %229 = vmatpush.bf16.msra.mxu0 %v164
  %230 = vmatpush.bf16.msra.mxu0 %v161
  %231 = vmatpush.bf16.msra.mxu0 %v158
  %232 = vmatmul.bf16.gmra.mxu0 %v73
  %v233 = vpop.f32.mrf.mxu0
  %v234 = vadd.f32 %v60, %v233
  %v235 = vpop.f32.mrf.mxu0
  %v236 = vadd.f32 %v60, %v235
  %237 = vmatmul.bf16.gmra.mxu0 %v74
  %v238 = vpop.f32.mrf.mxu0
  %v239 = vadd.f32 %v60, %v238
  %v240 = vpop.f32.mrf.mxu0
  %v241 = vadd.f32 %v60, %v240
  %242 = vdwg.mxu0
  %243 = vmatpush.bf16.msra.mxu0 %v180
  %244 = vmatpush.bf16.msra.mxu0 %v177
  %245 = vmatpush.bf16.msra.mxu0 %v174
  %246 = vmatpush.bf16.msra.mxu0 %v171
  %247 = vmatpush.bf16.msra.mxu0 %v168
  %248 = vmatpush.bf16.msra.mxu0 %v165
  %249 = vmatpush.bf16.msra.mxu0 %v162
  %250 = vmatpush.bf16.msra.mxu0 %v159
  %251 = vmatmul.bf16.gmra.mxu0 %v73
  %v252 = vpop.f32.mrf.mxu0
  %v253 = vadd.f32 %v61, %v252
  %v254 = vpop.f32.mrf.mxu0
  %v255 = vadd.f32 %v61, %v254
  %256 = vmatmul.bf16.gmra.mxu0 %v74
  %v257 = vpop.f32.mrf.mxu0
  %v258 = vadd.f32 %v61, %v257
  %v259 = vpop.f32.mrf.mxu0
  %v260 = vadd.f32 %v61, %v259
  %261 = vdwg.mxu0
  %v262 = vpack.c.bf16 %v215, %v215
  %v263 = vpack.c.bf16 %v217, %v217
  %v264 = vpack.c.bf16 %v220, %v220
  %v265 = vpack.c.bf16 %v222, %v222
  %v266 = vpack.c.bf16 %v234, %v234
  %v267 = vpack.c.bf16 %v236, %v236
  %v268 = vpack.c.bf16 %v239, %v239
  %v269 = vpack.c.bf16 %v241, %v241
  %v272 = vunpack.c.l.b16 %v262
  %v273 = vunpack.c.l.b16 %v263
  %v274 = vpack.c.b16 %v273, %v272
  %v278 = vunpack.c.l.b16 %v266
  %v279 = vunpack.c.l.b16 %v267
  %v280 = vpack.c.b16 %v279, %v278
  %282 = vmatpush.bf16.xpose.msra.mxu0 0
  %283 = vmatpush.bf16.xpose.msra.mxu0 0
  %284 = vmatpush.bf16.xpose.msra.mxu0 0
  %285 = vmatpush.bf16.xpose.msra.mxu0 0
  %286 = vmatpush.bf16.xpose.msra.mxu0 0
  %287 = vmatpush.bf16.xpose.msra.mxu0 0
  %288 = vmatpush.bf16.xpose.msra.mxu0 0
  %289 = vmatpush.bf16.xpose.msra.mxu0 %v280
  %290 = vmatmul.bf16.gmra.mxu0 %v274
  %v291 = vpop.f32.mrf.mxu0
  %v292 = vadd.f32 0.0, %v291
  %v293 = vpop.f32.mrf.mxu0
  %v294 = vadd.f32 0.0, %v293
  %295 = vdwg.mxu0
  %v298 = vunpack.c.l.b16 %v264
  %v299 = vunpack.c.l.b16 %v265
  %v300 = vpack.c.b16 %v299, %v298
  %v304 = vunpack.c.l.b16 %v268
  %v305 = vunpack.c.l.b16 %v269
  %v306 = vpack.c.b16 %v305, %v304
  %308 = vmatpush.bf16.xpose.msra.mxu0 0
  %309 = vmatpush.bf16.xpose.msra.mxu0 0
  %310 = vmatpush.bf16.xpose.msra.mxu0 0
  %311 = vmatpush.bf16.xpose.msra.mxu0 0
  %312 = vmatpush.bf16.xpose.msra.mxu0 0
  %313 = vmatpush.bf16.xpose.msra.mxu0 0
  %314 = vmatpush.bf16.xpose.msra.mxu0 0
  %315 = vmatpush.bf16.xpose.msra.mxu0 %v306
  %316 = vmatmul.bf16.gmra.mxu0 %v300
  %v317 = vpop.f32.mrf.mxu0
  %v318 = vadd.f32 0.0, %v317
  %v319 = vpop.f32.mrf.mxu0
  %v320 = vadd.f32 0.0, %v319
  %321 = vdwg.mxu0
  %vm322 = vcmask 130048
  %v323 = vsel %vm322, %v292, -inf
  %324 = vmax.xlane.f32.xlu0 %v323
  %v325 = vpop.xlane.xlu0 %324
  %v326 = vsel %vm322, %v294, -inf
  %327 = vmax.xlane.f32.xlu0 %v326
  %v328 = vpop.xlane.xlu0 %327
  %v329 = vsel %vm322, %v318, -inf
  %330 = vmax.xlane.f32.xlu0 %v329
  %v331 = vpop.xlane.xlu0 %330
  %v332 = vsel %vm322, %v320, -inf
  %333 = vmax.xlane.f32.xlu0 %v332
  %v334 = vpop.xlane.xlu0 %333
  %v335 = vsub.f32 %v292, %v325
  %v336 = vsub.f32 %v294, %v328
  %v337 = vsub.f32 %v318, %v331
  %v338 = vsub.f32 %v320, %v334
  %v339 = vmul.f32 %v335, 1.442695
  %v340 = vpow.pop %v339
  %v341 = vmul.f32 %v336, 1.442695
  %v342 = vpow.pop %v341
  %v343 = vmul.f32 %v337, 1.442695
  %v344 = vpow.pop %v343
  %v345 = vmul.f32 %v338, 1.442695
  %v346 = vpow.pop %v345
  %v347 = vsel %vm322, %v340, 0.0
  %348 = vadd.xlane.f32.xlu0 %v347
  %v349 = vpop.xlane.xlu0 %348
  %v350 = vsel %vm322, %v342, 0.0
  %351 = vadd.xlane.f32.xlu0 %v350
  %v352 = vpop.xlane.xlu0 %351
  %v353 = vsel %vm322, %v344, 0.0
  %354 = vadd.xlane.f32.xlu0 %v353
  %v355 = vpop.xlane.xlu0 %354
  %v356 = vsel %vm322, %v346, 0.0
  %357 = vadd.xlane.f32.xlu0 %v356
  %v358 = vpop.xlane.xlu0 %357
  %v359 = vrcp.pop %v349
  %v360 = vrcp.pop %v352
  %v361 = vrcp.pop %v355
  %v362 = vrcp.pop %v358
  %v363 = vpack.c.bf16 %v340, %v340
  %v364 = vpack.c.bf16 %v342, %v342
  %v365 = vpack.c.bf16 %v344, %v344
  %v366 = vpack.c.bf16 %v346, %v346
  %v367 = vpack.c.bf16 %v253, %v253
  %v368 = vpack.c.bf16 %v255, %v255
  %v369 = vpack.c.bf16 %v258, %v258
  %v370 = vpack.c.bf16 %v260, %v260
  %v373 = vunpack.c.l.b16 %v363
  %v374 = vunpack.c.l.b16 %v364
  %v375 = vpack.c.b16 %v374, %v373
  %v378 = vunpack.c.l.b16 %v367
  %v379 = vunpack.c.l.b16 %v368
  %v380 = vpack.c.b16 %v379, %v378
  %v383 = vsel %vm322, %v375, 0
  %385 = vmatpush.bf16.msra.mxu0 0
  %386 = vmatpush.bf16.msra.mxu0 0
  %387 = vmatpush.bf16.msra.mxu0 0
  %388 = vmatpush.bf16.msra.mxu0 0
  %389 = vmatpush.bf16.msra.mxu0 0
  %390 = vmatpush.bf16.msra.mxu0 0
  %391 = vmatpush.bf16.msra.mxu0 0
  %392 = vmatpush.bf16.msra.mxu0 %v380
  %393 = vmatmul.bf16.gmra.mxu0 %v383
  %v394 = vpop.f32.mrf.mxu0
  %v395 = vadd.f32 0.0, %v394
  %v396 = vpop.f32.mrf.mxu0
  %v397 = vadd.f32 0.0, %v396
  %398 = vdwg.mxu0
  %v401 = vunpack.c.l.b16 %v365
  %v402 = vunpack.c.l.b16 %v366
  %v403 = vpack.c.b16 %v402, %v401
  %v406 = vunpack.c.l.b16 %v369
  %v407 = vunpack.c.l.b16 %v370
  %v408 = vpack.c.b16 %v407, %v406
  %v411 = vsel %vm322, %v403, 0
  %413 = vmatpush.bf16.msra.mxu0 0
  %414 = vmatpush.bf16.msra.mxu0 0
  %415 = vmatpush.bf16.msra.mxu0 0
  %416 = vmatpush.bf16.msra.mxu0 0
  %417 = vmatpush.bf16.msra.mxu0 0
  %418 = vmatpush.bf16.msra.mxu0 0
  %419 = vmatpush.bf16.msra.mxu0 0
  %420 = vmatpush.bf16.msra.mxu0 %v408
  %421 = vmatmul.bf16.gmra.mxu0 %v411
  %v422 = vpop.f32.mrf.mxu0
  %v423 = vadd.f32 0.0, %v422
  %v424 = vpop.f32.mrf.mxu0
  %v425 = vadd.f32 0.0, %v424
  %426 = vdwg.mxu0
  %v427 = vmul.f32 %v395, %v359
  %v428 = vmul.f32 %v397, %v360
  %v429 = vmul.f32 %v423, %v361
  %v430 = vmul.f32 %v425, %v362
  %v431 = vpack.c.bf16 %v428, %v427
  %v432 = vpack.c.bf16 %v430, %v429
  %v433 = vld [vmem:[%s3] sm:$0xf]
  %v434 = vld [vmem:[%s3 + $0x4] sm:$0xf]
  %v435 = vld [vmem:[%s3 + $0x8] sm:$0xf]
  %v436 = vld [vmem:[%s3 + $0xc] sm:$0xf]
  %v437 = vld [vmem:[%s3 + $0x10] sm:$0xf]
  %v438 = vld [vmem:[%s3 + $0x14] sm:$0xf]
  %v439 = vld [vmem:[%s3 + $0x18] sm:$0xf]
  %v440 = vld [vmem:[%s3 + $0x1c] sm:$0xf]
  %v441 = vld [vmem:[%s3 + $0x20] sm:$0xf]
  %v442 = vld [vmem:[%s3 + $0x24] sm:$0xf]
  %v443 = vld [vmem:[%s3 + $0x28] sm:$0xf]
  %v444 = vld [vmem:[%s3 + $0x2c] sm:$0xf]
  %v445 = vld [vmem:[%s3 + $0x30] sm:$0xf]
  %v446 = vld [vmem:[%s3 + $0x34] sm:$0xf]
  %v447 = vld [vmem:[%s3 + $0x38] sm:$0xf]
  %v448 = vld [vmem:[%s3 + $0x3c] sm:$0xf]
  %v449 = vld [vmem:[%s4] sm:$0x1]
  %v451 = vperm.slane %v449, 0
  %v469 = vunpack.c.l.b16 %v433
  %v470 = vunpack.c.l.b16 %v434
  %v471 = vunpack.c.l.b16 %v435
  %v472 = vunpack.c.l.b16 %v436
  %v473 = vunpack.c.l.b16 %v437
  %v474 = vunpack.c.l.b16 %v438
  %v475 = vunpack.c.l.b16 %v439
  %v476 = vunpack.c.l.b16 %v440
  %v477 = vunpack.c.l.b16 %v441
  %v478 = vunpack.c.l.b16 %v442
  %v479 = vunpack.c.l.b16 %v443
  %v480 = vunpack.c.l.b16 %v444
  %v481 = vunpack.c.l.b16 %v445
  %v482 = vunpack.c.l.b16 %v446
  %v483 = vunpack.c.l.b16 %v447
  %v484 = vunpack.c.l.b16 %v448
  %v485 = vpack.c.b16 %v470, %v469
  %v486 = vpack.c.b16 %v472, %v471
  %v487 = vpack.c.b16 %v474, %v473
  %v488 = vpack.c.b16 %v476, %v475
  %v489 = vpack.c.b16 %v478, %v477
  %v490 = vpack.c.b16 %v480, %v479
  %v491 = vpack.c.b16 %v482, %v481
  %v492 = vpack.c.b16 %v484, %v483
  %501 = vmatpush.bf16.msra.mxu0 %v492
  %502 = vmatpush.bf16.msra.mxu0 %v491
  %503 = vmatpush.bf16.msra.mxu0 %v490
  %504 = vmatpush.bf16.msra.mxu0 %v489
  %505 = vmatpush.bf16.msra.mxu0 %v488
  %506 = vmatpush.bf16.msra.mxu0 %v487
  %507 = vmatpush.bf16.msra.mxu0 %v486
  %508 = vmatpush.bf16.msra.mxu0 %v485
  %509 = vmatmul.bf16.gmra.mxu0 %v431
  %v510 = vpop.f32.mrf.mxu0
  %v511 = vadd.f32 %v451, %v510
  %v512 = vpop.f32.mrf.mxu0
  %v513 = vadd.f32 %v451, %v512
  %514 = vmatmul.bf16.gmra.mxu0 %v432
  %v515 = vpop.f32.mrf.mxu0
  %v516 = vadd.f32 %v451, %v515
  %v517 = vpop.f32.mrf.mxu0
  %v518 = vadd.f32 %v451, %v517
  %519 = vdwg.mxu0
  %v520 = vld [vmem:[%s0] sm:$0xf]
  %v521 = vld [vmem:[%s0 + $0x4] sm:$0xf]
  %v522 = vld [vmem:[%s0 + $0x8] sm:$0xf]
  %v523 = vld [vmem:[%s0 + $0xc] sm:$0xf]
  %v524 = vunpack.c.l.bf16 %v520
  %v525 = vunpack.c.l.bf16 %v521
  %v526 = vunpack.c.l.bf16 %v522
  %v527 = vunpack.c.l.bf16 %v523
  %v528 = vadd.f32 %v511, %v524
  %v529 = vadd.f32 %v513, %v525
  %v530 = vadd.f32 %v516, %v526
  %v531 = vadd.f32 %v518, %v527
  %532 = vst [vmem:[%s5] sm:$0xff] %v528
  %533 = vst [vmem:[%s5 + $0x8] sm:$0xff] %v529
  %534 = vst [vmem:[%s5 + $0x10] sm:$0xff] %v530
  %535 = vst [vmem:[%s5 + $0x18] sm:$0xff] %v531
  // Predicated region
  $region22: #{qkv_attention.1} parent=0 // pred_check
    _
  $region23: #{qkv_attention.1} parent=0 // pred_check_branch
    %537 = sbr.rel (0) target = $region25
  $region24: #{qkv_attention.1} parent=0 // pred_region
    _
  $region25: #{qkv_attention.1} parent=0 // pred_fallthru
    _
  // Predicated region
  $region26: #{qkv_attention.1} parent=0 // pred_check
    _
  $region27: #{qkv_attention.1} parent=0 // pred_check_branch
    %539 = sbr.rel (0) target = $region29
  $region28: #{qkv_attention.1} parent=0 // pred_region
    _
  $region29: #{qkv_attention.1} parent=0 // pred_fallthru
    _

</llo_original>
